<compile_context>
chip_gen: v7x
topology: tpu7x:2x2x1
jax: 0.10.0
libtpu: 0.0.40
codegen_flags: <defaults>
</compile_context>

<pallas_src>
import functools

import jax
import jax.numpy as jnp
from jax.experimental import pallas as pl
from jax.experimental.pallas import tpu as pltpu

EPS = 1e-5
_LANE = 128
_TARGET_BLOCK_BYTES = 2 * 1024 * 1024  # ~2 MiB per x block -> safe on v5e/v6e/v7x


def _pono_kernel(x_ref, gamma_ref, beta_ref, y_ref, mean_ref, std_ref, *, eps):
    # x_ref:     (1, C, T)   one batch sample x one HW tile
    # gamma_ref: (1, 1, T)
    # beta_ref:  (1, 1, T)
    # TODO(synk): for thin-channel inputs (C < 8) the sublane axis is underfilled;
    # a (C, k, HW/k) repack would recover vreg density but is not done here.
    x = x_ref[...].astype(jnp.float32)                          # (1, C, T)
    c = x.shape[1]

    mean = jnp.mean(x, axis=1, keepdims=True)                   # (1, 1, T)
    diff = x - mean
    # Unbiased variance (torch.var default): divide by (C - 1). Requires C > 1.
    var = jnp.sum(diff * diff, axis=1, keepdims=True) / jnp.float32(c - 1)
    std = jnp.sqrt(var + jnp.float32(eps))                      # (1, 1, T)

    # Fold gamma into 1/std so the (C, T) body is just one mul + one add.
    inv_std = 1.0 / std                                         # per-lane only
    scale = gamma_ref[...].astype(jnp.float32) * inv_std        # (1, 1, T)
    shift = beta_ref[...].astype(jnp.float32)                   # (1, 1, T)
    y = diff * scale + shift                                    # (1, C, T)

    y_ref[...] = y.astype(y_ref.dtype)
    mean_ref[...] = mean.astype(mean_ref.dtype)
    std_ref[...] = std.astype(std_ref.dtype)


def _choose_hw_tile(c, hw, itemsize):
    """Largest multiple of 128 s.t. the (1, C, T) x block is ~<= 2 MiB."""
    hw_lane = pl.cdiv(hw, _LANE) * _LANE
    t = (_TARGET_BLOCK_BYTES // max(1, c * itemsize)) // _LANE * _LANE
    t = max(_LANE, t)
    return min(t, hw_lane)


def pono_forward(x, gamma, beta, eps=EPS):
    """x: (N, C, H, W); gamma/beta: (1, 1, H, W). Returns (y, mean, std) in NCHW."""
    n, c, h, w = x.shape
    hw = h * w

    t_hw = _choose_hw_tile(c, hw, jnp.dtype(x.dtype).itemsize)
    hw_pad = pl.cdiv(hw, t_hw) * t_hw
    n_hw_tiles = hw_pad // t_hw

    x2 = x.reshape(n, c, hw)
    gamma2 = gamma.reshape(1, 1, hw).astype(jnp.float32)
    beta2 = beta.reshape(1, 1, hw).astype(jnp.float32)
    if hw_pad != hw:
        pad = hw_pad - hw
        x2 = jnp.pad(x2, ((0, 0), (0, 0), (0, pad)))
        gamma2 = jnp.pad(gamma2, ((0, 0), (0, 0), (0, pad)))
        beta2 = jnp.pad(beta2, ((0, 0), (0, 0), (0, pad)))

    out_shapes = (
        jax.ShapeDtypeStruct((n, c, hw_pad), x.dtype),   # y
        jax.ShapeDtypeStruct((n, 1, hw_pad), x.dtype),   # mean (matches torch: x.dtype)
        jax.ShapeDtypeStruct((n, 1, hw_pad), x.dtype),   # std
    )

    kernel = functools.partial(_pono_kernel, eps=eps)

    y2, mean2, std2 = pl.pallas_call(
        kernel,
        out_shape=out_shapes,
        grid=(n, n_hw_tiles),
        in_specs=[
            pl.BlockSpec((1, c, t_hw), lambda i, j: (i, 0, j)),   # x: sample i, HW tile j
            pl.BlockSpec((1, 1, t_hw), lambda i, j: (0, 0, j)),   # gamma: HW tile j
            pl.BlockSpec((1, 1, t_hw), lambda i, j: (0, 0, j)),   # beta:  HW tile j
        ],
        out_specs=(
            pl.BlockSpec((1, c, t_hw), lambda i, j: (i, 0, j)),
            pl.BlockSpec((1, 1, t_hw), lambda i, j: (i, 0, j)),
            pl.BlockSpec((1, 1, t_hw), lambda i, j: (i, 0, j)),
        ),
        compiler_params=pltpu.CompilerParams(
            dimension_semantics=("parallel", "parallel"),
            vmem_limit_bytes=32 * 1024 * 1024,
        ),
    )(x2, gamma2, beta2)

    if hw_pad != hw:
        y2 = y2[:, :, :hw]
        mean2 = mean2[:, :, :hw]
        std2 = std2[:, :, :hw]

    return (
        y2.reshape(n, c, h, w),
        mean2.reshape(n, 1, h, w),
        std2.reshape(n, 1, h, w),
    )


def _pono_reference(x, gamma, beta, eps=EPS):
    mean = jnp.mean(x, axis=1, keepdims=True)
    var = jnp.var(x, axis=1, keepdims=True, ddof=1)  # unbiased, like torch default
    std = jnp.sqrt(var + eps)
    y = (x - mean) / std
    y = y * gamma + beta
    return y, mean, std


if __name__ == "__main__":
    N, C, H, W = 2, 4, 16, 16

    key = jax.random.PRNGKey(0)
    x = jax.random.normal(key, (N, C, H, W), dtype=jnp.float32)

    # Deterministic parameter init matching the module's __init__:
    # beta = zeros(1, 1, H, W), gamma = ones(1, 1, H, W)
    gamma = jnp.ones((1, 1, H, W), dtype=jnp.float32)
    beta = jnp.zeros((1, 1, H, W), dtype=jnp.float32)

    y, mean, std = pono_forward(x, gamma, beta)
    jax.block_until_ready((y, mean, std))

    # sanity-check against pure-JAX reference
    y_ref, mean_ref, std_ref = _pono_reference(x, gamma, beta)
    assert jnp.allclose(y, y_ref, atol=1e-5, rtol=1e-5)
    assert jnp.allclose(mean, mean_ref, atol=1e-6, rtol=1e-6)
    assert jnp.allclose(std, std_ref, atol=1e-6, rtol=1e-6)

    print("KERNEL_OK")
</pallas_src>

<mosaic_0001>
module attributes {stable_mosaic.version = 11 : i64} {
  func.func @_pono_kernel(%arg0: i32, %arg1: i32, %arg2: memref<1x4x256xf32, #tpu.memory_space<vmem>>, %arg3: memref<1x1x256xf32, #tpu.memory_space<vmem>>, %arg4: memref<1x1x256xf32, #tpu.memory_space<vmem>>, %arg5: memref<1x4x256xf32, #tpu.memory_space<vmem>>, %arg6: memref<1x1x256xf32, #tpu.memory_space<vmem>>, %arg7: memref<1x1x256xf32, #tpu.memory_space<vmem>>) attributes {dimension_semantics = [#tpu.dimension_semantics<parallel>, #tpu.dimension_semantics<parallel>], iteration_bounds = array<i64: 2, 1>, scalar_prefetch = 0 : i64, scratch_operands = 0 : i64, tpu.core_type = #tpu.core_type<tc>, window_params = [{transform_indices = @transform_0, window_bounds = array<i64: 1, 4, 256>}, {transform_indices = @transform_1, window_bounds = array<i64: 1, 1, 256>}, {transform_indices = @transform_2, window_bounds = array<i64: 1, 1, 256>}, {transform_indices = @transform_3, window_bounds = array<i64: 1, 4, 256>}, {transform_indices = @transform_4, window_bounds = array<i64: 1, 1, 256>}, {transform_indices = @transform_5, window_bounds = array<i64: 1, 1, 256>}]} {
    %c0 = arith.constant 0 : index
    %c0_0 = arith.constant 0 : index
    %c0_1 = arith.constant 0 : index
    %0 = vector.load %arg2[%c0, %c0_0, %c0_1] : memref<1x4x256xf32, #tpu.memory_space<vmem>>, vector<1x4x256xf32>
    %cst = arith.constant dense<0.000000e+00> : vector<1x256xf32>
    %1 = vector.multi_reduction <add>, %0, %cst [1] : vector<1x4x256xf32> to vector<1x256xf32>
    %2 = vector.shape_cast %1 : vector<1x256xf32> to vector<1x1x256xf32>
    %cst_2 = arith.constant 4.000000e+00 : f32
    %3 = vector.broadcast %cst_2 : f32 to vector<1x1x256xf32>
    %4 = arith.divf %2, %3 : vector<1x1x256xf32>
    %5 = vector.broadcast %4 : vector<1x1x256xf32> to vector<1x4x256xf32>
    %6 = arith.subf %0, %5 : vector<1x4x256xf32>
    %7 = arith.mulf %6, %6 : vector<1x4x256xf32>
    %cst_3 = arith.constant dense<0.000000e+00> : vector<1x256xf32>
    %8 = vector.multi_reduction <add>, %7, %cst_3 [1] : vector<1x4x256xf32> to vector<1x256xf32>
    %9 = vector.shape_cast %8 : vector<1x256xf32> to vector<1x1x256xf32>
    %cst_4 = arith.constant 3.000000e+00 : f32
    %10 = vector.broadcast %cst_4 : f32 to vector<1x1x256xf32>
    %11 = arith.divf %9, %10 : vector<1x1x256xf32>
    %cst_5 = arith.constant 9.99999974E-6 : f32
    %12 = vector.broadcast %cst_5 : f32 to vector<1x1x256xf32>
    %13 = arith.addf %11, %12 : vector<1x1x256xf32>
    %14 = math.sqrt %13 : vector<1x1x256xf32>
    %cst_6 = arith.constant 1.000000e+00 : f32
    %15 = vector.broadcast %cst_6 : f32 to vector<1x1x256xf32>
    %16 = arith.divf %15, %14 : vector<1x1x256xf32>
    %c0_7 = arith.constant 0 : index
    %c0_8 = arith.constant 0 : index
    %c0_9 = arith.constant 0 : index
    %17 = vector.load %arg3[%c0_7, %c0_8, %c0_9] : memref<1x1x256xf32, #tpu.memory_space<vmem>>, vector<1x1x256xf32>
    %18 = arith.mulf %17, %16 : vector<1x1x256xf32>
    %c0_10 = arith.constant 0 : index
    %c0_11 = arith.constant 0 : index
    %c0_12 = arith.constant 0 : index
    %19 = vector.load %arg4[%c0_10, %c0_11, %c0_12] : memref<1x1x256xf32, #tpu.memory_space<vmem>>, vector<1x1x256xf32>
    %20 = vector.broadcast %18 : vector<1x1x256xf32> to vector<1x4x256xf32>
    %21 = arith.mulf %6, %20 : vector<1x4x256xf32>
    %22 = vector.broadcast %19 : vector<1x1x256xf32> to vector<1x4x256xf32>
    %23 = arith.addf %21, %22 : vector<1x4x256xf32>
    %c0_13 = arith.constant 0 : index
    %c0_14 = arith.constant 0 : index
    %c0_15 = arith.constant 0 : index
    %24 = vector.load %arg5[%c0_13, %c0_14, %c0_15] : memref<1x4x256xf32, #tpu.memory_space<vmem>>, vector<1x4x256xf32>
    tpu.vector_store %arg5[%c0_13, %c0_14, %c0_15], %23 {strides = array<i32>} : memref<1x4x256xf32, #tpu.memory_space<vmem>>, vector<1x4x256xf32>,
    %c0_16 = arith.constant 0 : index
    %c0_17 = arith.constant 0 : index
    %c0_18 = arith.constant 0 : index
    %25 = vector.load %arg6[%c0_16, %c0_17, %c0_18] : memref<1x1x256xf32, #tpu.memory_space<vmem>>, vector<1x1x256xf32>
    tpu.vector_store %arg6[%c0_16, %c0_17, %c0_18], %4 {strides = array<i32>} : memref<1x1x256xf32, #tpu.memory_space<vmem>>, vector<1x1x256xf32>,
    %c0_19 = arith.constant 0 : index
    %c0_20 = arith.constant 0 : index
    %c0_21 = arith.constant 0 : index
    %26 = vector.load %arg7[%c0_19, %c0_20, %c0_21] : memref<1x1x256xf32, #tpu.memory_space<vmem>>, vector<1x1x256xf32>
    tpu.vector_store %arg7[%c0_19, %c0_20, %c0_21], %14 {strides = array<i32>} : memref<1x1x256xf32, #tpu.memory_space<vmem>>, vector<1x1x256xf32>,
    return
  }
  func.func @transform_0(%arg0: i32, %arg1: i32) -> (i32, i32, i32) {
    %c0_i32 = arith.constant 0 : i32
    %c0_i32_0 = arith.constant 0 : i32
    return %arg0, %c0_i32, %arg1 : i32, i32, i32
  }
  func.func @transform_1(%arg0: i32, %arg1: i32) -> (i32, i32, i32) {
    %c0_i32 = arith.constant 0 : i32
    %c0_i32_0 = arith.constant 0 : i32
    %c0_i32_1 = arith.constant 0 : i32
    return %c0_i32, %c0_i32_0, %arg1 : i32, i32, i32
  }
  func.func @transform_2(%arg0: i32, %arg1: i32) -> (i32, i32, i32) {
    %c0_i32 = arith.constant 0 : i32
    %c0_i32_0 = arith.constant 0 : i32
    %c0_i32_1 = arith.constant 0 : i32
    return %c0_i32, %c0_i32_0, %arg1 : i32, i32, i32
  }
  func.func @transform_3(%arg0: i32, %arg1: i32) -> (i32, i32, i32) {
    %c0_i32 = arith.constant 0 : i32
    %c0_i32_0 = arith.constant 0 : i32
    return %arg0, %c0_i32, %arg1 : i32, i32, i32
  }
  func.func @transform_4(%arg0: i32, %arg1: i32) -> (i32, i32, i32) {
    %c0_i32 = arith.constant 0 : i32
    %c0_i32_0 = arith.constant 0 : i32
    return %arg0, %c0_i32, %arg1 : i32, i32, i32
  }
  func.func @transform_5(%arg0: i32, %arg1: i32) -> (i32, i32, i32) {
    %c0_i32 = arith.constant 0 : i32
    %c0_i32_0 = arith.constant 0 : i32
    return %arg0, %c0_i32, %arg1 : i32, i32, i32
  }
}

</mosaic_0001>

<llo_original>
// kernel: tpu_custom_call.1
$region0: #{tpu_custom_call.1}
  #allocation0 [shape = 'u32[]', space=smem, size = 0x4, offset = 0x4, fixed_abs, tag = 'smem constant byte address 0x4 - core index']
  #allocation1 [shape = 'u32[144,128]{1,0:T(1,128)}', space=vmem, size = 0x12000, scoped, tag = 'internal scratch']
  %s0 = inlined_call_operand.hbm [shape: f32[2,4,256], index: 0, kind: input, shape index: {}]
  %s1 = inlined_call_operand.vmem [shape: f32[1,1,256], index: 1, kind: input, shape index: {}]
  %s2 = inlined_call_operand.vmem [shape: f32[1,1,256], index: 2, kind: input, shape index: {}]
  %s3 = inlined_call_operand.hbm [shape: f32[2,4,256], index: 3, kind: output, shape index: {0}]
  %s4 = inlined_call_operand.hbm [shape: f32[2,1,256], index: 4, kind: output, shape index: {1}]
  %s5 = inlined_call_operand.hbm [shape: f32[2,1,256], index: 5, kind: output, shape index: {2}]
  %6 = xla_tuple %s3, %s4, %s5
  %s7 = sld [smem:[#allocation0]]
  $region65: #{tpu_custom_call.1} parent=0
    _
  %s9 = ssub.s32 1, %s7
  %s10 = scalar_select 0, %s9, %s7
  $region1: #{tpu_custom_call.1} parent=0
    #allocation2 [shape = 'u8[8192]{0}', space=vmem, size = 0x2000, scoped, tag = 'input window, operand 0']
    #allocation3 [shape = 's32[2]{0}', space=sflag, size = 0x8, scoped, tag = 'scoped memory for tpu_custom_call.1']
    #allocation4 [shape = 's32[2]{0}', space=sflag, size = 0x8, scoped, tag = 'scoped memory for tpu_custom_call.1']
    #allocation5 [shape = 'u8[8192]{0}', space=vmem, size = 0x2000, scoped, tag = 'output window, operand 0']
    #allocation6 [shape = 'u8[2048]{0}', space=vmem, size = 0x800, scoped, tag = 'output window, operand 1']
    #allocation7 [shape = 's32[2]{0}', space=sflag, size = 0x8, scoped, tag = 'scoped memory for tpu_custom_call.1']
    #allocation8 [shape = 'u8[2048]{0}', space=vmem, size = 0x800, scoped, tag = 'output window, operand 2']
    %11 = vsyncpa [#allocation3], 0
    %s12 = scalar_lea.sflag [#allocation3], 1
    %13 = vsyncpa %s12, 0
    %14 = vsyncpa [#allocation4], 0
    %s15 = scalar_lea.sflag [#allocation4], 1
    %16 = vsyncpa %s15, 0
    %17 = vsyncpa [#allocation7], 0
    %s18 = scalar_lea.sflag [#allocation7], 1
    %19 = vsyncpa %s18, 0
    loop: start=0, step=1, limit=4
    $region2: #{tpu_custom_call.1} parent=1 // loop_pre_header
      _
    $region3: #{tpu_custom_call.1} parent=1 // loop_header
      %s21 = sphi 0, %s25
      %p22 = scmp.ge.s32.totalorder %s21, 4
      %s28 = sphi 0, %s40
      %s29 = sphi 0, %s36
      %s30 = sphi 0, %s28
      %s31 = sphi 0, %s29
      %s32 = sphi 0, %s30
      %s33 = sphi 0, %s31
      %s45 = sphi 0, %s47
      %s48 = sphi 0, %s45
      %s49 = sphi 0, %s48
      %s65 = sphi 0, %s49
      %s71 = sphi 0, %s73
      %s74 = sphi 0, %s71
      %s75 = sphi 0, %s74
      %s91 = sphi 0, %s75
      %s97 = sphi 0, %s99
      %s100 = sphi 0, %s97
      %s101 = sphi 0, %s100
      %s117 = sphi 0, %s101
      %s125 = sphi 0, %s127
      %s128 = sphi 0, %s125
      %s129 = sphi 0, %s128
      %s145 = sphi 0, %s129
      %s153 = sphi 0, %s155
      %s156 = sphi 0, %s153
      %s157 = sphi 0, %s156
      %s173 = sphi 0, %s157
      %s181 = sphi 0, %s183
      %s184 = sphi 0, %s181
      %s185 = sphi 0, %s184
      %s201 = sphi 0, %s185
    $region4: #{tpu_custom_call.1} parent=1 // loop_header_branch
      %24 = sbr.rel (%p22) target = $region8
    $region5: #{tpu_custom_call.1} parent=1 // loop_body
      %s26 = ssub.s32 %s21, 1
      %s27 = ssub.s32 %s21, 2
      %s34 = sadd.s32 1, %s29
      %p35 = scmp.ge.s32.totalorder %s34, 1
      %s36 = scalar_select %p35, 0, %s34
      %s37 = sadd.s32 1, %s28
      %s38 = scalar_select %p35, %s37, %s28
      %p39 = scmp.ge.s32.totalorder %s38, 2
      %s40 = scalar_select %p39, 0, %s38
      %s41 = ssub.s32 %s28, %s40
      %s42 = ssub.s32 %s29, %s36
      %s43 = sor.u32 %s41, %s42
      %p44 = scmp.eq.s32.totalorder %s43, 0
      %s46 = sadd.s32 %s45, 1
      %s47 = scalar_select %p44, %s45, %s46
      %p50 = pneg %p44
      %p51 = scmp.eq.s32.totalorder %s21, 1
      %p52 = por %p50, %p51
      %p53 = scmp.ne.s32.totalorder %s45, %s48
      %p54 = scmp.eq.s32.totalorder %s21, 0
      %p55 = por %p53, %p54
      %p56 = scmp.ne.s32.totalorder %s45, %s48
      %p57 = scmp.eq.s32.totalorder %s26, 1
      %p58 = por %p56, %p57
      %p59 = scmp.ne.s32.totalorder %s48, %s49
      %p60 = scmp.eq.s32.totalorder %s26, 0
      %p61 = por %p59, %p60
      %p62 = scmp.ne.s32.totalorder %s48, %s49
      %p63 = scmp.eq.s32.totalorder %s27, 1
      %p64 = por %p62, %p63
      %p66 = scmp.ne.s32.totalorder %s49, %s65
      %p67 = scmp.eq.s32.totalorder %s27, 0
      %p68 = por %p66, %p67
      %s69 = ssub.s32 %s29, %s36
      %p70 = scmp.eq.s32.totalorder %s69, 0
      %s72 = sadd.s32 %s71, 1
      %s73 = scalar_select %p70, %s71, %s72
      %p76 = pneg %p70
      %p77 = scmp.eq.s32.totalorder %s21, 1
      %p78 = por %p76, %p77
      %p79 = scmp.ne.s32.totalorder %s71, %s74
      %p80 = scmp.eq.s32.totalorder %s21, 0
      %p81 = por %p79, %p80
      %p82 = scmp.ne.s32.totalorder %s71, %s74
      %p83 = scmp.eq.s32.totalorder %s26, 1
      %p84 = por %p82, %p83
      %p85 = scmp.ne.s32.totalorder %s74, %s75
      %p86 = scmp.eq.s32.totalorder %s26, 0
      %p87 = por %p85, %p86
      %p88 = scmp.ne.s32.totalorder %s74, %s75
      %p89 = scmp.eq.s32.totalorder %s27, 1
      %p90 = por %p88, %p89
      %p92 = scmp.ne.s32.totalorder %s75, %s91
      %p93 = scmp.eq.s32.totalorder %s27, 0
      %p94 = por %p92, %p93
      %s95 = ssub.s32 %s29, %s36
      %p96 = scmp.eq.s32.totalorder %s95, 0
      %s98 = sadd.s32 %s97, 1
      %s99 = scalar_select %p96, %s97, %s98
      %p102 = pneg %p96
      %p103 = scmp.eq.s32.totalorder %s21, 1
      %p104 = por %p102, %p103
      %p105 = scmp.ne.s32.totalorder %s97, %s100
      %p106 = scmp.eq.s32.totalorder %s21, 0
      %p107 = por %p105, %p106
      %p108 = scmp.ne.s32.totalorder %s97, %s100
      %p109 = scmp.eq.s32.totalorder %s26, 1
      %p110 = por %p108, %p109
      %p111 = scmp.ne.s32.totalorder %s100, %s101
      %p112 = scmp.eq.s32.totalorder %s26, 0
      %p113 = por %p111, %p112
      %p114 = scmp.ne.s32.totalorder %s100, %s101
      %p115 = scmp.eq.s32.totalorder %s27, 1
      %p116 = por %p114, %p115
      %p118 = scmp.ne.s32.totalorder %s101, %s117
      %p119 = scmp.eq.s32.totalorder %s27, 0
      %p120 = por %p118, %p119
      %s121 = ssub.s32 %s28, %s40
      %s122 = ssub.s32 %s29, %s36
      %s123 = sor.u32 %s121, %s122
      %p124 = scmp.eq.s32.totalorder %s123, 0
      %s126 = sadd.s32 %s125, 1
      %s127 = scalar_select %p124, %s125, %s126
      %p130 = pneg %p124
      %p131 = scmp.eq.s32.totalorder %s21, 1
      %p132 = por %p130, %p131
      %p133 = scmp.ne.s32.totalorder %s125, %s128
      %p134 = scmp.eq.s32.totalorder %s21, 0
      %p135 = por %p133, %p134
      %p136 = scmp.ne.s32.totalorder %s125, %s128
      %p137 = scmp.eq.s32.totalorder %s26, 1
      %p138 = por %p136, %p137
      %p139 = scmp.ne.s32.totalorder %s128, %s129
      %p140 = scmp.eq.s32.totalorder %s26, 0
      %p141 = por %p139, %p140
      %p142 = scmp.ne.s32.totalorder %s128, %s129
      %p143 = scmp.eq.s32.totalorder %s27, 1
      %p144 = por %p142, %p143
      %p146 = scmp.ne.s32.totalorder %s129, %s145
      %p147 = scmp.eq.s32.totalorder %s27, 0
      %p148 = por %p146, %p147
      %s149 = ssub.s32 %s28, %s40
      %s150 = ssub.s32 %s29, %s36
      %s151 = sor.u32 %s149, %s150
      %p152 = scmp.eq.s32.totalorder %s151, 0
      %s154 = sadd.s32 %s153, 1
      %s155 = scalar_select %p152, %s153, %s154
      %p158 = pneg %p152
      %p159 = scmp.eq.s32.totalorder %s21, 1
      %p160 = por %p158, %p159
      %p161 = scmp.ne.s32.totalorder %s153, %s156
      %p162 = scmp.eq.s32.totalorder %s21, 0
      %p163 = por %p161, %p162
      %p164 = scmp.ne.s32.totalorder %s153, %s156
      %p165 = scmp.eq.s32.totalorder %s26, 1
      %p166 = por %p164, %p165
      %p167 = scmp.ne.s32.totalorder %s156, %s157
      %p168 = scmp.eq.s32.totalorder %s26, 0
      %p169 = por %p167, %p168
      %p170 = scmp.ne.s32.totalorder %s156, %s157
      %p171 = scmp.eq.s32.totalorder %s27, 1
      %p172 = por %p170, %p171
      %p174 = scmp.ne.s32.totalorder %s157, %s173
      %p175 = scmp.eq.s32.totalorder %s27, 0
      %p176 = por %p174, %p175
      %s177 = ssub.s32 %s28, %s40
      %s178 = ssub.s32 %s29, %s36
      %s179 = sor.u32 %s177, %s178
      %p180 = scmp.eq.s32.totalorder %s179, 0
      %s182 = sadd.s32 %s181, 1
      %s183 = scalar_select %p180, %s181, %s182
      %p186 = pneg %p180
      %p187 = scmp.eq.s32.totalorder %s21, 1
      %p188 = por %p186, %p187
      %p189 = scmp.ne.s32.totalorder %s181, %s184
      %p190 = scmp.eq.s32.totalorder %s21, 0
      %p191 = por %p189, %p190
      %p192 = scmp.ne.s32.totalorder %s181, %s184
      %p193 = scmp.eq.s32.totalorder %s26, 1
      %p194 = por %p192, %p193
      %p195 = scmp.ne.s32.totalorder %s184, %s185
      %p196 = scmp.eq.s32.totalorder %s26, 0
      %p197 = por %p195, %p196
      %p198 = scmp.ne.s32.totalorder %s184, %s185
      %p199 = scmp.eq.s32.totalorder %s27, 1
      %p200 = por %p198, %p199
      %p202 = scmp.ne.s32.totalorder %s185, %s201
      %p203 = scmp.eq.s32.totalorder %s27, 0
      %p204 = por %p202, %p203
      %p205 = scmp.le.s32.totalorder 1, %s21
      %p206 = scmp.lt.s32.totalorder %s21, 3
      %p207 = pnand %p205, %p206
      %p208 = pneg %p207
      // Predicated region
      $region9: #{tpu_custom_call.1} parent=5 // pred_check
        _
      $region10: #{tpu_custom_call.1} parent=5 // pred_check_branch
        %210 = sbr.rel (%p207) target = $region12
      $region11: #{tpu_custom_call.1} parent=5 // pred_region
        %s211 = ssub.s32 %s21, 1
        // Predicated region
        $region13: #{tpu_custom_call.1} parent=11 // pred_check
          %p212 = pneg %p87
        $region14: #{tpu_custom_call.1} parent=11 // pred_check_branch
          %214 = sbr.rel (%p212) target = $region16
        $region15: #{tpu_custom_call.1} parent=11 // pred_region
          %s215 = smul.u32 2, %s31
          %p216 = scmp.lt.s32.totalorder %s215, 1
          %s217 = scalar_select %p216, %s215, 1
          %s218 = scalar_lea.vmem %s1, %s217
          %s219 = smul.u32 2, %s31
        $region16: #{tpu_custom_call.1} parent=11 // pred_fallthru
          _
        // Predicated region
        $region17: #{tpu_custom_call.1} parent=11 // pred_check
          %p220 = pneg %p113
        $region18: #{tpu_custom_call.1} parent=11 // pred_check_branch
          %222 = sbr.rel (%p220) target = $region20
        $region19: #{tpu_custom_call.1} parent=11 // pred_region
          %s223 = smul.u32 2, %s31
          %p224 = scmp.lt.s32.totalorder %s223, 1
          %s225 = scalar_select %p224, %s223, 1
          %s226 = scalar_lea.vmem %s2, %s225
          %s227 = smul.u32 2, %s31
        $region20: #{tpu_custom_call.1} parent=11 // pred_fallthru
          _
      $region12: #{tpu_custom_call.1} parent=5 // pred_fallthru
        _
      %p228 = scmp.lt.s32.totalorder %s21, 2
      // Predicated region
      $region21: #{tpu_custom_call.1} parent=5 // pred_check
        %p229 = pneg %p228
      $region22: #{tpu_custom_call.1} parent=5 // pred_check_branch
        %231 = sbr.rel (%p229) target = $region24
      $region23: #{tpu_custom_call.1} parent=5 // pred_region
        // Predicated region
        $region25: #{tpu_custom_call.1} parent=23 // pred_check
          %p232 = pneg %p55
        $region26: #{tpu_custom_call.1} parent=23 // pred_check_branch
          %234 = sbr.rel (%p232) target = $region28
        $region27: #{tpu_custom_call.1} parent=23 // pred_region
          %s235 = sand.u32 %s45, 1
          %s236 = scalar_lea.sflag [#allocation3], %s235
          %s237 = sand.u32 %s45, 1
          %s238 = smul.addr %s237, 8
          %s239 = scalar_lea.vmem [#allocation2], %s238
          %s240 = smul.u32 2, %s29
          %s242 = ssub.s32 128, 128
          %243 = vsyncadd %s236, %s242
          %s244 = smul.addr %s28, 2
          %s245 = sadd.s32 %s240, %s244
          %s246 = smul.addr %s245, 64
          %s247 = scalar_lea.hbm %s0, %s246
          %s249 = sshll.u32 %s239, 4
          %s250 = int_to_ptr.vmem [resolvable:$true] %s249
          %252 = dma.hbm_to_vmem [thread:$0]  %s247, 128, %s250, %s236
        $region28: #{tpu_custom_call.1} parent=23 // pred_fallthru
          _
      $region24: #{tpu_custom_call.1} parent=5 // pred_fallthru
        _
      %p253 = scmp.le.s32.totalorder 1, %s21
      %p254 = scmp.lt.s32.totalorder %s21, 3
      %p255 = pnand %p253, %p254
      %p256 = pneg %p255
      // Predicated region
      $region29: #{tpu_custom_call.1} parent=5 // pred_check
        _
      $region30: #{tpu_custom_call.1} parent=5 // pred_check_branch
        %258 = sbr.rel (%p255) target = $region32
      $region31: #{tpu_custom_call.1} parent=5 // pred_region
        %s259 = ssub.s32 %s21, 1
        %s260 = sand.u32 %s48, 1
        %s261 = scalar_lea.sflag [#allocation3], %s260
        %s262 = sand.u32 %s48, 1
        %s263 = smul.addr %s262, 8
        %s264 = scalar_lea.vmem [#allocation2], %s263
        // Predicated region
        $region33: #{tpu_custom_call.1} parent=31 // pred_check
          %p265 = pneg %p61
        $region34: #{tpu_custom_call.1} parent=31 // pred_check_branch
          %267 = sbr.rel (%p265) target = $region36
        $region35: #{tpu_custom_call.1} parent=31 // pred_region
          %268 = dma.done %s261, 128
        $region36: #{tpu_custom_call.1} parent=31 // pred_fallthru
          _
        %s269 = sand.u32 %s48, 1
        %s270 = scalar_lea.sflag [#allocation3], %s269
        %s271 = sand.u32 %s48, 1
        %s272 = smul.addr %s271, 8
        %s273 = scalar_lea.vmem [#allocation2], %s272
        %p274 = pneg %p61
        %p275 = pneg %p58
        %s276 = smul.u32 2, %s31
        %p277 = scmp.lt.s32.totalorder %s276, 1
        %s278 = scalar_select %p277, %s276, 1
        %s279 = scalar_lea.vmem %s1, %s278
        %p280 = pneg %p87
        %p281 = pneg %p84
        %s282 = smul.u32 2, %s31
        %p283 = scmp.lt.s32.totalorder %s282, 1
        %s284 = scalar_select %p283, %s282, 1
        %s285 = scalar_lea.vmem %s2, %s284
        %p286 = pneg %p113
        %p287 = pneg %p110
        %p288 = pneg %p141
        %p289 = pneg %p138
        %s290 = sand.u32 %s128, 1
        %s291 = scalar_lea.sflag [#allocation4], %s290
        %s292 = sand.u32 %s128, 1
        %s293 = smul.addr %s292, 8
        %s294 = scalar_lea.vmem [#allocation5], %s293
        %p295 = pneg %p169
        %p296 = pneg %p166
        %s297 = sand.u32 %s26, 1
        %s298 = scalar_lea.sflag [#allocation7], %s297
        %s299 = sand.u32 %s156, 1
        %s300 = smul.addr %s299, 2
        %s301 = scalar_lea.vmem [#allocation6], %s300
        %p302 = pneg %p197
        %p303 = pneg %p194
        %s304 = sand.u32 %s26, 1
        %s305 = scalar_lea.sflag [#allocation7], %s304
        %s306 = sand.u32 %s184, 1
        %s307 = smul.addr %s306, 2
        %s308 = scalar_lea.vmem [#allocation8], %s307
        %s309 = smul.u32 2, %s31
        %s310 = smul.u32 2, %s31
        %p311 = scmp.lt.s32.totalorder %s310, 1
        %s312 = scalar_select %p311, %s310, 1
        %s313 = scalar_lea.vmem %s1, %s312
        %s314 = smul.u32 2, %s31
        %s315 = smul.u32 2, %s31
        %p316 = scmp.lt.s32.totalorder %s315, 1
        %s317 = scalar_select %p316, %s315, 1
        %s318 = scalar_lea.vmem %s2, %s317
        %s319 = smul.u32 2, %s31
        %s320 = smul.u32 2, %s31
        %s321 = smul.u32 2, %s31
        %s322 = smul.u32 2, %s31
        %v323 = vld [vmem:[%s264] sm:$0xff]
        %v325 = vcombine.high %v323, %v323
        %vm327 = vcmask 1043456
        %v328 = vsel %vm327, %v323, 0.0
        %v329 = vrot.slane %v328, 4
        %v330 = vadd.f32 %v328, %v329
        %v331 = vrot.slane %v330, 2
        %v332 = vadd.f32 %v330, %v331
        %v333 = vrot.slane %v332, 1
        %v334 = vadd.f32 %v332, %v333
        %v335 = vsel %vm327, %v325, 0.0
        %v336 = vrot.slane %v335, 4
        %v337 = vadd.f32 %v335, %v336
        %v338 = vrot.slane %v337, 2
        %v339 = vadd.f32 %v337, %v338
        %v340 = vrot.slane %v339, 1
        %v341 = vadd.f32 %v339, %v340
        %v342 = vrcp.pop 4.0
        %v343 = vmul.f32 %v334, %v342
        %v344 = vmul.f32 %v341, %v342
        %v347 = vcombine.low %v343, %v344
        %v349 = vsub.f32 %v323, %v347
        %v350 = vmul.f32 %v349, %v349
        %v352 = vcombine.high %v350, %v350
        %v354 = vsel %vm327, %v350, 0.0
        %v355 = vrot.slane %v354, 4
        %v356 = vadd.f32 %v354, %v355
        %v357 = vrot.slane %v356, 2
        %v358 = vadd.f32 %v356, %v357
        %v359 = vrot.slane %v358, 1
        %v360 = vadd.f32 %v358, %v359
        %v361 = vsel %vm327, %v352, 0.0
        %v362 = vrot.slane %v361, 4
        %v363 = vadd.f32 %v361, %v362
        %v364 = vrot.slane %v363, 2
        %v365 = vadd.f32 %v363, %v364
        %v366 = vrot.slane %v365, 1
        %v367 = vadd.f32 %v365, %v366
        %v368 = vrcp.pop 3.0
        %v369 = vmul.f32 %v360, %v368
        %v370 = vmul.f32 %v367, %v368
        %v371 = vadd.f32 %v369, 1e-05
        %v372 = vadd.f32 %v370, 1e-05
        %v373 = vrsqrt.pop %v371
        %v374 = vmul.f32 %v371, %v373
        %vm375 = vcmp.eq.f32.partialorder %v371, inf
        %v376 = vsel %vm375, %v371, %v374
        %vm377 = vcmp.eq.f32.partialorder %v371, 0.0
        %v378 = vand.u32 %v371, 2147483648
        %v379 = vsel %vm377, %v378, %v376
        %v380 = vrsqrt.pop %v372
        %v381 = vmul.f32 %v372, %v380
        %vm382 = vcmp.eq.f32.partialorder %v372, inf
        %v383 = vsel %vm382, %v372, %v381
        %vm384 = vcmp.eq.f32.partialorder %v372, 0.0
        %v385 = vand.u32 %v372, 2147483648
        %v386 = vsel %vm384, %v385, %v383
        %v387 = vrcp.pop %v379
        %v388 = vmul.f32 1.0, %v387
        %v389 = vrcp.pop %v386
        %v390 = vmul.f32 1.0, %v389
        %v391 = vld [vmem:[%s313] sm:$0x3]
        %v394 = vcombine.low %v388, %v390
        %v396 = vunpack.c.l.s4 1966171168
        %v397 = vunpack.c.0.s8 %v396
        %v398 = vlaneseq
        %v399 = vshrl.u32 %v398, 7
        %v400 = vsub.s32 %v397, %v399
        %v401 = vrot.slane %v394, %v400
        %v403 = vunpack.c.l.s4 1966171168
        %v404 = vunpack.c.0.s8 %v403
        %v405 = vlaneseq
        %v406 = vshrl.u32 %v405, 7
        %v407 = vsub.s32 %v404, %v406
        %v408 = vrot.slane %v401, %v407
        %v410 = vmul.f32 %v391, %v408
        %v411 = vld [vmem:[%s318] sm:$0x3]
        %v413 = vlaneseq
        %v414 = vshrl.u32 %v413, 7
        %v415 = vsub.s32 0, %v414
        %v416 = vrot.slane %v410, %v415
        %v417 = vlaneseq
        %v418 = vshrl.u32 %v417, 7
        %v419 = vsub.s32 1, %v418
        %v420 = vrot.slane %v410, %v419
        %v421 = vcombine.low %v416, %v420
        %v423 = vmul.f32 %v349, %v421
        %v425 = vlaneseq
        %v426 = vshrl.u32 %v425, 7
        %v427 = vsub.s32 0, %v426
        %v428 = vrot.slane %v411, %v427
        %v429 = vlaneseq
        %v430 = vshrl.u32 %v429, 7
        %v431 = vsub.s32 1, %v430
        %v432 = vrot.slane %v411, %v431
        %v433 = vcombine.low %v428, %v432
        %v435 = vadd.f32 %v423, %v433
        %436 = vst [vmem:[%s294] sm:$0xff] %v435
        %v438 = vunpack.c.l.s4 1966171168
        %v439 = vunpack.c.0.s8 %v438
        %v440 = vlaneseq
        %v441 = vshrl.u32 %v440, 7
        %v442 = vsub.s32 %v439, %v441
        %v443 = vrot.slane %v347, %v442
        %v445 = vunpack.c.l.s4 1966171168
        %v446 = vunpack.c.0.s8 %v445
        %v447 = vlaneseq
        %v448 = vshrl.u32 %v447, 7
        %v449 = vsub.s32 %v446, %v448
        %v450 = vrot.slane %v443, %v449
        %v452 = vlaneseq
        %vm453 = vcmp.ge.s32.totalorder %v452, 0
        %vm454 = vcmp.lt.s32.totalorder %v452, 256
        %vm455 = vmand %vm453, %vm454
        %456 = vst.msk [vmem:[%s301] sm:$0x3] %vm455, %v450
        %v459 = vcombine.low %v379, %v386
        %v461 = vunpack.c.l.s4 1966171168
        %v462 = vunpack.c.0.s8 %v461
        %v463 = vlaneseq
        %v464 = vshrl.u32 %v463, 7
        %v465 = vsub.s32 %v462, %v464
        %v466 = vrot.slane %v459, %v465
        %v468 = vunpack.c.l.s4 1966171168
        %v469 = vunpack.c.0.s8 %v468
        %v470 = vlaneseq
        %v471 = vshrl.u32 %v470, 7
        %v472 = vsub.s32 %v469, %v471
        %v473 = vrot.slane %v466, %v472
        %475 = vst.msk [vmem:[%s308] sm:$0x3] %vm455, %v473
        %s476 = sand.u32 %s128, 1
        %s477 = scalar_lea.sflag [#allocation4], %s476
        %s478 = sand.u32 %s128, 1
        %s479 = smul.addr %s478, 8
        %s480 = scalar_lea.vmem [#allocation5], %s479
        %s481 = sand.u32 %s26, 1
        %s482 = scalar_lea.sflag [#allocation7], %s481
        %s483 = sand.u32 %s156, 1
        %s484 = smul.addr %s483, 2
        %s485 = scalar_lea.vmem [#allocation6], %s484
        %s486 = sand.u32 %s26, 1
        %s487 = scalar_lea.sflag [#allocation7], %s486
        %s488 = sand.u32 %s184, 1
        %s489 = smul.addr %s488, 2
        %s490 = scalar_lea.vmem [#allocation8], %s489
        // Predicated region
        $region37: #{tpu_custom_call.1} parent=31 // pred_check
          %p491 = pneg %p138
        $region38: #{tpu_custom_call.1} parent=31 // pred_check_branch
          %493 = sbr.rel (%p491) target = $region40
        $region39: #{tpu_custom_call.1} parent=31 // pred_region
          %s494 = smul.u32 2, %s31
          %s496 = ssub.s32 128, 128
          %497 = vsyncadd %s477, %s496
          %s498 = smul.addr %s30, 2
          %s499 = sadd.s32 %s494, %s498
          %s500 = smul.addr %s499, 64
          %s501 = scalar_lea.hbm %s3, %s500
          %s503 = sshll.u32 %s480, 4
          %s504 = int_to_ptr.vmem [resolvable:$true] %s503
          %506 = dma.vmem_to_hbm [thread:$0]  %s504, 128, %s501, %s477
        $region40: #{tpu_custom_call.1} parent=31 // pred_fallthru
          _
        // Predicated region
        $region41: #{tpu_custom_call.1} parent=31 // pred_check
          %p507 = pneg %p166
        $region42: #{tpu_custom_call.1} parent=31 // pred_check_branch
          %509 = sbr.rel (%p507) target = $region44
        $region43: #{tpu_custom_call.1} parent=31 // pred_region
          %s510 = smul.u32 2, %s31
          %s512 = ssub.s32 32, 32
          %513 = vsyncadd %s482, %s512
          %s514 = smul.addr %s30, 2
          %s515 = sadd.s32 %s510, %s514
          %s516 = smul.addr %s515, 16
          %s517 = scalar_lea.hbm %s4, %s516
          %s519 = sshll.u32 %s485, 4
          %s520 = int_to_ptr.vmem [resolvable:$true] %s519
          %522 = dma.vmem_to_hbm [thread:$0]  %s520, 32, %s517, %s482
        $region44: #{tpu_custom_call.1} parent=31 // pred_fallthru
          _
        // Predicated region
        $region45: #{tpu_custom_call.1} parent=31 // pred_check
          %p523 = pneg %p194
        $region46: #{tpu_custom_call.1} parent=31 // pred_check_branch
          %525 = sbr.rel (%p523) target = $region48
        $region47: #{tpu_custom_call.1} parent=31 // pred_region
          %s526 = smul.u32 2, %s31
          %s528 = ssub.s32 32, 32
          %529 = vsyncadd %s487, %s528
          %s530 = smul.addr %s30, 2
          %s531 = sadd.s32 %s526, %s530
          %s532 = smul.addr %s531, 16
          %s533 = scalar_lea.hbm %s5, %s532
          %s535 = sshll.u32 %s490, 4
          %s536 = int_to_ptr.vmem [resolvable:$true] %s535
          %538 = dma.vmem_to_hbm [thread:$0]  %s536, 32, %s533, %s487
        $region48: #{tpu_custom_call.1} parent=31 // pred_fallthru
          _
      $region32: #{tpu_custom_call.1} parent=5 // pred_fallthru
        _
      %p539 = scmp.le.s32.totalorder 2, %s21
      // Predicated region
      $region49: #{tpu_custom_call.1} parent=5 // pred_check
        %p540 = pneg %p539
      $region50: #{tpu_custom_call.1} parent=5 // pred_check_branch
        %542 = sbr.rel (%p540) target = $region52
      $region51: #{tpu_custom_call.1} parent=5 // pred_region
        %s543 = ssub.s32 %s21, 2
        // Predicated region
        $region53: #{tpu_custom_call.1} parent=51 // pred_check
          %p544 = pneg %p144
        $region54: #{tpu_custom_call.1} parent=51 // pred_check_branch
          %546 = sbr.rel (%p544) target = $region56
        $region55: #{tpu_custom_call.1} parent=51 // pred_region
          %s547 = sand.u32 %s129, 1
          %s548 = scalar_lea.sflag [#allocation4], %s547
          %s549 = sand.u32 %s129, 1
          %s550 = smul.addr %s549, 8
          %s551 = scalar_lea.vmem [#allocation5], %s550
          %552 = dma.done %s548, 128
        $region56: #{tpu_custom_call.1} parent=51 // pred_fallthru
          _
        // Predicated region
        $region57: #{tpu_custom_call.1} parent=51 // pred_check
          %p553 = pneg %p172
        $region58: #{tpu_custom_call.1} parent=51 // pred_check_branch
          %555 = sbr.rel (%p553) target = $region60
        $region59: #{tpu_custom_call.1} parent=51 // pred_region
          %s556 = sand.u32 %s27, 1
          %s557 = scalar_lea.sflag [#allocation7], %s556
          %s558 = sand.u32 %s157, 1
          %s559 = smul.addr %s558, 2
          %s560 = scalar_lea.vmem [#allocation6], %s559
          %561 = dma.done %s557, 32
        $region60: #{tpu_custom_call.1} parent=51 // pred_fallthru
          _
        // Predicated region
        $region61: #{tpu_custom_call.1} parent=51 // pred_check
          %p562 = pneg %p200
        $region62: #{tpu_custom_call.1} parent=51 // pred_check_branch
          %564 = sbr.rel (%p562) target = $region64
        $region63: #{tpu_custom_call.1} parent=51 // pred_region
          %s565 = sand.u32 %s27, 1
          %s566 = scalar_lea.sflag [#allocation7], %s565
          %s567 = sand.u32 %s185, 1
          %s568 = smul.addr %s567, 2
          %s569 = scalar_lea.vmem [#allocation8], %s568
          %570 = dma.done %s566, 32
        $region64: #{tpu_custom_call.1} parent=51 // pred_fallthru
          _
      $region52: #{tpu_custom_call.1} parent=5 // pred_fallthru
        _
    $region6: #{tpu_custom_call.1} parent=1 // loop_footer
      %s25 = sadd.s32 1, %s21
    $region7: #{tpu_custom_call.1} parent=1 // loop_footer_branch
      %20 = sbr.rel target = $region3
    $region8: #{tpu_custom_call.1} parent=1 // loop_exit
      _
    %571 = vsyncpa [#allocation3], 1
    %s572 = scalar_lea.sflag [#allocation3], 1
    %573 = vsyncpa %s572, 1
    %574 = vsyncpa [#allocation4], 1
    %s575 = scalar_lea.sflag [#allocation4], 1
    %576 = vsyncpa %s575, 1
    %577 = vsyncpa [#allocation7], 1
    %s578 = scalar_lea.sflag [#allocation7], 1
    %579 = vsyncpa %s578, 1

</llo_original>
